<compile_context>
chip_gen: v5e
topology: v5e:2x2
jax: 0.10.0
libtpu: 0.0.40
codegen_flags: <defaults>
</compile_context>

<pallas_src>
import functools

import jax
import jax.numpy as jnp
from jax.experimental import pallas as pl
from jax.experimental.pallas import tpu as pltpu


def _make_lane_gather(L):
    """Returns gather(x, s) with gather(x, s)[..., i] = x[..., (i + s) % L]."""
    def gather(x, s):
        amt = (-s) % L
        if amt == 0:
            return x
        # XLU lane rotation (vector-extended slot): effectively free next to
        # the MXU/VPU work, and no VMEM temporaries unlike slice+concat.
        return pltpu.roll(x, shift=amt, axis=1)
    return gather


def _conv3x3_reflect_in(cur, w, masks, H, W, relu):
    """3x3 conv (reflect pad=1) + InstanceNorm(affine=False, eps=1e-5) [+ReLU].

    cur   : (Cin, H*W) f32, spatial flattened on the lane axis.
    w     : (Cout, 9*Cin) bf16, column index = (ky*3 + kx)*Cin + cin.
    masks : (is_top, is_bot, is_left, is_right), each (1, H*W) bool
            (broadcast inside the selects; no (C, H*W) masks materialized).

    Bias is intentionally omitted: a per-channel constant is exactly cancelled
    by the mean subtraction of the affine-free InstanceNorm that follows.
    """
    _, HW = cur.shape
    is_top, is_bot, is_left, is_right = masks
    gather = _make_lane_gather(HW)

    # Lazily-memoized lane rotations (<= 9 distinct shifts, XLU ops).
    rolls = {}

    def R(dy, dx):
        key = (dy, dx)
        if key not in rolls:
            rolls[key] = gather(cur, dy * W + dx)
        return rolls[key]

    taps = []
    for dy in (-1, 0, 1):
        rmask = is_top if dy == -1 else (is_bot if dy == 1 else None)
        for dx in (-1, 0, 1):
            cmask = is_left if dx == -1 else (is_right if dx == 1 else None)
            tap = R(dy, dx)
            # Boundary lanes read a wrapped (wrong) element after the flat
            # rotation; replace them with the reflected in-range source.
            if rmask is not None and cmask is not None:
                tap = jnp.where(
                    rmask & cmask, R(-dy, -dx),
                    jnp.where(rmask, R(-dy, dx),
                              jnp.where(cmask, R(dy, -dx), tap)))
            elif rmask is not None:
                tap = jnp.where(rmask, R(-dy, dx), tap)
            elif cmask is not None:
                tap = jnp.where(cmask, R(dy, -dx), tap)
            taps.append(tap)

    # Fold the 9 taps into the contraction: one (Cout, 9*Cin) @ (9*Cin, H*W)
    # MXU matmul in bf16 with f32 accumulation, instead of 9 accumulated dots.
    # TODO(synk): at production C/H/W, chunk H*W into halo'd spatial tiles and
    # accumulate the InstanceNorm sums across chunks (the 9x tap stack must not
    # be materialized at full H*W under v7x's 64 MiB VMEM).
    stack = jnp.concatenate(taps, axis=0).astype(jnp.bfloat16)
    acc = jnp.dot(w, stack, preferred_element_type=jnp.float32)  # (Cout, HW)

    # InstanceNorm(affine=False, eps=1e-5): two-pass (centered) stats in f32.
    inv_hw = 1.0 / HW
    m = jnp.sum(acc, axis=-1, keepdims=True) * inv_hw
    d = acc - m
    var = jnp.sum(d * d, axis=-1, keepdims=True) * inv_hw
    y = d * jax.lax.rsqrt(var + 1e-5)
    if relu:
        y = jnp.maximum(y, 0.0)
    return y


def _resnet_block_kernel(x_ref, w_ref, o_ref, *, H, W):
    # x_ref / o_ref : (1, C, H*W) lane-dense tiles for one batch element.
    # w_ref         : (2, C, 9*C) bf16 folded weight stacks (conv1, conv2).
    _, C, HW = x_ref.shape

    lane = jax.lax.broadcasted_iota(jnp.int32, (1, HW), 1)
    if W & (W - 1) == 0:
        w_idx = jnp.bitwise_and(lane, W - 1)
    else:
        w_idx = lane % W
    masks = (lane < W,          # h == 0
             lane >= HW - W,    # h == H-1
             w_idx == 0,        # w == 0
             w_idx == W - 1)    # w == W-1

    xin = x_ref[0].astype(jnp.float32)
    h1 = _conv3x3_reflect_in(xin, w_ref[0], masks, H, W, relu=True)
    h2 = _conv3x3_reflect_in(h1, w_ref[1], masks, H, W, relu=False)

    # Residual: re-read x from the ref at the end (keeps live state bounded).
    o_ref[0] = (x_ref[0].astype(jnp.float32) + h2).astype(o_ref.dtype)


def _fold_conv_weight(w):
    # (Cout, Cin, 3, 3) -> (Cout, 9*Cin) with column (ky*3+kx)*Cin + cin,
    # matching the in-kernel tap-stack ordering; bf16 -> single MXU pass.
    cout, cin, kh, kw = w.shape
    return (jnp.transpose(w, (0, 2, 3, 1))
            .reshape(cout, kh * kw * cin)
            .astype(jnp.bfloat16))


def resnet_block(x, w1, b1, w2, b2):
    """Fused ResnetBlock forward (reflect pad, InstanceNorm affine=False), NCHW.

    b1/b2 accepted for API parity but unused: InstanceNorm2d(affine=False)
    subtracts the per-channel mean, which exactly cancels a per-channel bias.
    """
    del b1, b2
    N, C, H, W = x.shape
    HW = H * W
    xf = x.reshape(N, C, HW)                       # lane-dense spatial layout
    wcat = jnp.stack([_fold_conv_weight(w1), _fold_conv_weight(w2)], axis=0)

    kernel = functools.partial(_resnet_block_kernel, H=H, W=W)

    # Per-step VMEM budget: double-buffered I/O tiles + weights + in-kernel f32
    # temporaries (rolled taps, tap stack, acc), clamped to stay safe on v7x
    # (64 MiB physical) while remaining generous on v5e/v6e (128 MiB).
    io_bytes = 2 * 2 * C * HW * x.dtype.itemsize       # x + out, double-buffered
    w_bytes = 2 * int(wcat.size) * 2                   # bf16, double-buffered
    tmp_bytes = 16 * C * HW * 4                        # rolls + stack + acc (f32)
    vmem_limit = int(min(max(2 * (io_bytes + w_bytes + tmp_bytes),
                             32 * 1024 * 1024),
                         48 * 1024 * 1024))

    out = pl.pallas_call(
        kernel,
        out_shape=jax.ShapeDtypeStruct((N, C, HW), x.dtype),
        grid=(N,),
        in_specs=[
            pl.BlockSpec((1, C, HW), lambda n: (n, 0, 0)),
            # Constant across the grid (one combined weight DMA).
            # TODO(synk): at production C, request single-buffering for this
            # spec (pl.Buffered(1)) so the weight stack is not double-buffered.
            pl.BlockSpec((2, C, 9 * C), lambda n: (0, 0, 0)),
        ],
        out_specs=pl.BlockSpec((1, C, HW), lambda n: (n, 0, 0)),
        compiler_params=pltpu.CompilerParams(
            dimension_semantics=("parallel",),   # one sample per TC on v7x
            vmem_limit_bytes=vmem_limit),
    )(xf, wcat)
    return out.reshape(N, C, H, W)


def resnet_block_reference(x, w1, b1, w2, b2):
    # Pure-JAX reference matching the PyTorch module semantics (f32, biases in).
    def conv(h, w, b):
        hp = jnp.pad(h, ((0, 0), (0, 0), (1, 1), (1, 1)), mode="reflect")
        out = jax.lax.conv_general_dilated(
            hp, w, window_strides=(1, 1), padding="VALID",
            dimension_numbers=("NCHW", "OIHW", "NCHW"))
        return out + b[None, :, None, None]

    def inorm(h):
        m = jnp.mean(h, axis=(2, 3), keepdims=True)
        v = jnp.mean((h - m) ** 2, axis=(2, 3), keepdims=True)
        return (h - m) * jax.lax.rsqrt(v + 1e-5)

    h = jnp.maximum(inorm(conv(x, w1, b1)), 0.0)
    h = inorm(conv(h, w2, b2))
    return x + h


if __name__ == "__main__":
    N, C, H, W = 2, 4, 16, 16  # batch=2, dim=4, spatial=16
    key = jax.random.PRNGKey(0)
    kx_, kw1, kb1, kw2, kb2 = jax.random.split(key, 5)

    x = jax.random.normal(kx_, (N, C, H, W), dtype=jnp.float32)
    # Deterministic synthetic parameters (Conv2d(dim, dim, 3) x 2).
    w1 = 0.2 * jax.random.normal(kw1, (C, C, 3, 3), dtype=jnp.float32)
    b1 = 0.1 * jax.random.normal(kb1, (C,), dtype=jnp.float32)
    w2 = 0.2 * jax.random.normal(kw2, (C, C, 3, 3), dtype=jnp.float32)
    b2 = 0.1 * jax.random.normal(kb2, (C,), dtype=jnp.float32)

    out = jax.block_until_ready(resnet_block(x, w1, b1, w2, b2))
    ref = jax.block_until_ready(resnet_block_reference(x, w1, b1, w2, b2))

    assert out.shape == (N, C, H, W)
    err = float(jnp.max(jnp.abs(out - ref)))
    # Tolerance accounts for bf16 MXU operands (f32 accumulation) vs the f32
    # XLA conv reference path.
    assert jnp.allclose(out, ref, atol=5e-2, rtol=5e-2), err
    print("KERNEL_OK")
</pallas_src>

<mosaic_0001>
module attributes {stable_mosaic.version = 11 : i64} {
  func.func @_resnet_block_kernel(%arg0: i32, %arg1: memref<1x4x256xf32, #tpu.memory_space<vmem>>, %arg2: memref<2x4x36xbf16, #tpu.memory_space<vmem>>, %arg3: memref<1x4x256xf32, #tpu.memory_space<vmem>>) attributes {dimension_semantics = [#tpu.dimension_semantics<parallel>], iteration_bounds = array<i64: 2>, scalar_prefetch = 0 : i64, scratch_operands = 0 : i64, tpu.core_type = #tpu.core_type<tc>, window_params = [{transform_indices = @transform_0, window_bounds = array<i64: 1, 4, 256>}, {pipeline_mode = #tpu.pipeline_mode<synchronous>, transform_indices = @transform_1, window_bounds = array<i64: 2, 4, 36>}, {transform_indices = @transform_2, window_bounds = array<i64: 1, 4, 256>}]} {
    %0 = tpu.iota {dimensions = array<i32: 1>} : vector<1x256xi32>
    %c15_i32 = arith.constant 15 : i32
    %1 = vector.broadcast %c15_i32 : i32 to vector<1x256xi32>
    %2 = arith.andi %0, %1 : vector<1x256xi32>
    %c16_i32 = arith.constant 16 : i32
    %3 = vector.broadcast %c16_i32 : i32 to vector<1x256xi32>
    %4 = arith.cmpi slt, %0, %3 : vector<1x256xi32>
    %c240_i32 = arith.constant 240 : i32
    %5 = vector.broadcast %c240_i32 : i32 to vector<1x256xi32>
    %6 = arith.cmpi sge, %0, %5 : vector<1x256xi32>
    %c0_i32 = arith.constant 0 : i32
    %7 = vector.broadcast %c0_i32 : i32 to vector<1x256xi32>
    %8 = arith.cmpi eq, %2, %7 : vector<1x256xi32>
    %c15_i32_0 = arith.constant 15 : i32
    %9 = vector.broadcast %c15_i32_0 : i32 to vector<1x256xi32>
    %10 = arith.cmpi eq, %2, %9 : vector<1x256xi32>
    %c0 = arith.constant 0 : index
    %c0_1 = arith.constant 0 : index
    %c0_2 = arith.constant 0 : index
    %11 = vector.load %arg1[%c0, %c0_1, %c0_2] : memref<1x4x256xf32, #tpu.memory_space<vmem>>, vector<1x4x256xf32>
    %12 = vector.shape_cast %11 : vector<1x4x256xf32> to vector<4x256xf32>
    %c0_3 = arith.constant 0 : index
    %c0_4 = arith.constant 0 : index
    %c0_5 = arith.constant 0 : index
    %13 = vector.load %arg2[%c0_3, %c0_4, %c0_5] : memref<2x4x36xbf16, #tpu.memory_space<vmem>>, vector<1x4x36xbf16>
    %14 = vector.shape_cast %13 : vector<1x4x36xbf16> to vector<4x36xbf16>
    %c17_i32 = arith.constant 17 : i32
    %15 = tpu.dynamic_rotate %12 by %c17_i32 dim 1 : vector<4x256xf32>, i32 -> vector<4x256xf32>
    %16 = arith.andi %4, %8 : vector<1x256xi1>
    %c239_i32 = arith.constant 239 : i32
    %17 = tpu.dynamic_rotate %12 by %c239_i32 dim 1 : vector<4x256xf32>, i32 -> vector<4x256xf32>
    %c241_i32 = arith.constant 241 : i32
    %18 = tpu.dynamic_rotate %12 by %c241_i32 dim 1 : vector<4x256xf32>, i32 -> vector<4x256xf32>
    %c15_i32_6 = arith.constant 15 : i32
    %19 = tpu.dynamic_rotate %12 by %c15_i32_6 dim 1 : vector<4x256xf32>, i32 -> vector<4x256xf32>
    %20 = vector.shape_cast %8 : vector<1x256xi1> to vector<1x256xi1>
    %21 = vector.broadcast %20 : vector<1x256xi1> to vector<4x256xi1>
    %22 = arith.select %21, %19, %15 : vector<4x256xi1>, vector<4x256xf32>
    %23 = vector.shape_cast %4 : vector<1x256xi1> to vector<1x256xi1>
    %24 = vector.broadcast %23 : vector<1x256xi1> to vector<4x256xi1>
    %25 = arith.select %24, %18, %22 : vector<4x256xi1>, vector<4x256xf32>
    %26 = vector.shape_cast %16 : vector<1x256xi1> to vector<1x256xi1>
    %27 = vector.broadcast %26 : vector<1x256xi1> to vector<4x256xi1>
    %28 = arith.select %27, %17, %25 : vector<4x256xi1>, vector<4x256xf32>
    %c16_i32_7 = arith.constant 16 : i32
    %29 = tpu.dynamic_rotate %12 by %c16_i32_7 dim 1 : vector<4x256xf32>, i32 -> vector<4x256xf32>
    %c240_i32_8 = arith.constant 240 : i32
    %30 = tpu.dynamic_rotate %12 by %c240_i32_8 dim 1 : vector<4x256xf32>, i32 -> vector<4x256xf32>
    %31 = vector.shape_cast %4 : vector<1x256xi1> to vector<1x256xi1>
    %32 = vector.broadcast %31 : vector<1x256xi1> to vector<4x256xi1>
    %33 = arith.select %32, %30, %29 : vector<4x256xi1>, vector<4x256xf32>
    %34 = arith.andi %4, %10 : vector<1x256xi1>
    %35 = vector.shape_cast %10 : vector<1x256xi1> to vector<1x256xi1>
    %36 = vector.broadcast %35 : vector<1x256xi1> to vector<4x256xi1>
    %37 = arith.select %36, %15, %19 : vector<4x256xi1>, vector<4x256xf32>
    %38 = vector.shape_cast %4 : vector<1x256xi1> to vector<1x256xi1>
    %39 = vector.broadcast %38 : vector<1x256xi1> to vector<4x256xi1>
    %40 = arith.select %39, %17, %37 : vector<4x256xi1>, vector<4x256xf32>
    %41 = vector.shape_cast %34 : vector<1x256xi1> to vector<1x256xi1>
    %42 = vector.broadcast %41 : vector<1x256xi1> to vector<4x256xi1>
    %43 = arith.select %42, %18, %40 : vector<4x256xi1>, vector<4x256xf32>
    %c1_i32 = arith.constant 1 : i32
    %44 = tpu.dynamic_rotate %12 by %c1_i32 dim 1 : vector<4x256xf32>, i32 -> vector<4x256xf32>
    %c255_i32 = arith.constant 255 : i32
    %45 = tpu.dynamic_rotate %12 by %c255_i32 dim 1 : vector<4x256xf32>, i32 -> vector<4x256xf32>
    %46 = vector.shape_cast %8 : vector<1x256xi1> to vector<1x256xi1>
    %47 = vector.broadcast %46 : vector<1x256xi1> to vector<4x256xi1>
    %48 = arith.select %47, %45, %44 : vector<4x256xi1>, vector<4x256xf32>
    %49 = vector.shape_cast %10 : vector<1x256xi1> to vector<1x256xi1>
    %50 = vector.broadcast %49 : vector<1x256xi1> to vector<4x256xi1>
    %51 = arith.select %50, %44, %45 : vector<4x256xi1>, vector<4x256xf32>
    %52 = arith.andi %6, %8 : vector<1x256xi1>
    %53 = vector.shape_cast %8 : vector<1x256xi1> to vector<1x256xi1>
    %54 = vector.broadcast %53 : vector<1x256xi1> to vector<4x256xi1>
    %55 = arith.select %54, %17, %18 : vector<4x256xi1>, vector<4x256xf32>
    %56 = vector.shape_cast %6 : vector<1x256xi1> to vector<1x256xi1>
    %57 = vector.broadcast %56 : vector<1x256xi1> to vector<4x256xi1>
    %58 = arith.select %57, %15, %55 : vector<4x256xi1>, vector<4x256xf32>
    %59 = vector.shape_cast %52 : vector<1x256xi1> to vector<1x256xi1>
    %60 = vector.broadcast %59 : vector<1x256xi1> to vector<4x256xi1>
    %61 = arith.select %60, %19, %58 : vector<4x256xi1>, vector<4x256xf32>
    %62 = vector.shape_cast %6 : vector<1x256xi1> to vector<1x256xi1>
    %63 = vector.broadcast %62 : vector<1x256xi1> to vector<4x256xi1>
    %64 = arith.select %63, %29, %30 : vector<4x256xi1>, vector<4x256xf32>
    %65 = arith.andi %6, %10 : vector<1x256xi1>
    %66 = vector.shape_cast %10 : vector<1x256xi1> to vector<1x256xi1>
    %67 = vector.broadcast %66 : vector<1x256xi1> to vector<4x256xi1>
    %68 = arith.select %67, %18, %17 : vector<4x256xi1>, vector<4x256xf32>
    %69 = vector.shape_cast %6 : vector<1x256xi1> to vector<1x256xi1>
    %70 = vector.broadcast %69 : vector<1x256xi1> to vector<4x256xi1>
    %71 = arith.select %70, %19, %68 : vector<4x256xi1>, vector<4x256xf32>
    %72 = vector.shape_cast %65 : vector<1x256xi1> to vector<1x256xi1>
    %73 = vector.broadcast %72 : vector<1x256xi1> to vector<4x256xi1>
    %74 = arith.select %73, %15, %71 : vector<4x256xi1>, vector<4x256xf32>
    %75 = tpu.concatenate %28, %33, %43, %48, %12, %51, %61, %64, %74 in 0 : vector<4x256xf32>, vector<4x256xf32>, vector<4x256xf32>, vector<4x256xf32>, vector<4x256xf32>, vector<4x256xf32>, vector<4x256xf32>, vector<4x256xf32>, vector<4x256xf32> -> vector<36x256xf32>
    %76 = arith.truncf %75 : vector<36x256xf32> to vector<36x256xbf16>
    %cst = arith.constant dense<0.000000e+00> : vector<4x256xf32>
    %77 = tpu.matmul %14, %76, %cst {dimension_numbers = #tpu.dot_dimension_numbers<[1], [0], [0], [1], [0, 0, 1, 1], [], []>} : vector<4x36xbf16>, vector<36x256xbf16>, vector<4x256xf32> -> vector<4x256xf32>
    %cst_9 = arith.constant dense<0.000000e+00> : vector<4xf32>
    %78 = vector.multi_reduction <add>, %77, %cst_9 [1] : vector<4x256xf32> to vector<4xf32>
    %79 = vector.shape_cast %78 : vector<4xf32> to vector<4x1xf32>
    %cst_10 = arith.constant 3.906250e-03 : f32
    %80 = vector.broadcast %cst_10 : f32 to vector<4x1xf32>
    %81 = arith.mulf %79, %80 : vector<4x1xf32>
    %82 = vector.broadcast %81 : vector<4x1xf32> to vector<4x256xf32>
    %83 = arith.subf %77, %82 : vector<4x256xf32>
    %84 = arith.mulf %83, %83 : vector<4x256xf32>
    %cst_11 = arith.constant dense<0.000000e+00> : vector<4xf32>
    %85 = vector.multi_reduction <add>, %84, %cst_11 [1] : vector<4x256xf32> to vector<4xf32>
    %86 = vector.shape_cast %85 : vector<4xf32> to vector<4x1xf32>
    %cst_12 = arith.constant 3.906250e-03 : f32
    %87 = vector.broadcast %cst_12 : f32 to vector<4x1xf32>
    %88 = arith.mulf %86, %87 : vector<4x1xf32>
    %cst_13 = arith.constant 9.99999974E-6 : f32
    %89 = vector.broadcast %cst_13 : f32 to vector<4x1xf32>
    %90 = arith.addf %88, %89 : vector<4x1xf32>
    %91 = math.rsqrt %90 : vector<4x1xf32>
    %92 = vector.broadcast %91 : vector<4x1xf32> to vector<4x256xf32>
    %93 = arith.mulf %83, %92 : vector<4x256xf32>
    %cst_14 = arith.constant 0.000000e+00 : f32
    %94 = vector.broadcast %cst_14 : f32 to vector<4x256xf32>
    %95 = arith.maximumf %93, %94 : vector<4x256xf32>
    %c1 = arith.constant 1 : index
    %c0_15 = arith.constant 0 : index
    %c0_16 = arith.constant 0 : index
    %96 = vector.load %arg2[%c1, %c0_15, %c0_16] : memref<2x4x36xbf16, #tpu.memory_space<vmem>>, vector<1x4x36xbf16>
    %97 = vector.shape_cast %96 : vector<1x4x36xbf16> to vector<4x36xbf16>
    %c17_i32_17 = arith.constant 17 : i32
    %98 = tpu.dynamic_rotate %95 by %c17_i32_17 dim 1 : vector<4x256xf32>, i32 -> vector<4x256xf32>
    %99 = arith.andi %4, %8 : vector<1x256xi1>
    %c239_i32_18 = arith.constant 239 : i32
    %100 = tpu.dynamic_rotate %95 by %c239_i32_18 dim 1 : vector<4x256xf32>, i32 -> vector<4x256xf32>
    %c241_i32_19 = arith.constant 241 : i32
    %101 = tpu.dynamic_rotate %95 by %c241_i32_19 dim 1 : vector<4x256xf32>, i32 -> vector<4x256xf32>
    %c15_i32_20 = arith.constant 15 : i32
    %102 = tpu.dynamic_rotate %95 by %c15_i32_20 dim 1 : vector<4x256xf32>, i32 -> vector<4x256xf32>
    %103 = vector.shape_cast %8 : vector<1x256xi1> to vector<1x256xi1>
    %104 = vector.broadcast %103 : vector<1x256xi1> to vector<4x256xi1>
    %105 = arith.select %104, %102, %98 : vector<4x256xi1>, vector<4x256xf32>
    %106 = vector.shape_cast %4 : vector<1x256xi1> to vector<1x256xi1>
    %107 = vector.broadcast %106 : vector<1x256xi1> to vector<4x256xi1>
    %108 = arith.select %107, %101, %105 : vector<4x256xi1>, vector<4x256xf32>
    %109 = vector.shape_cast %99 : vector<1x256xi1> to vector<1x256xi1>
    %110 = vector.broadcast %109 : vector<1x256xi1> to vector<4x256xi1>
    %111 = arith.select %110, %100, %108 : vector<4x256xi1>, vector<4x256xf32>
    %c16_i32_21 = arith.constant 16 : i32
    %112 = tpu.dynamic_rotate %95 by %c16_i32_21 dim 1 : vector<4x256xf32>, i32 -> vector<4x256xf32>
    %c240_i32_22 = arith.constant 240 : i32
    %113 = tpu.dynamic_rotate %95 by %c240_i32_22 dim 1 : vector<4x256xf32>, i32 -> vector<4x256xf32>
    %114 = vector.shape_cast %4 : vector<1x256xi1> to vector<1x256xi1>
    %115 = vector.broadcast %114 : vector<1x256xi1> to vector<4x256xi1>
    %116 = arith.select %115, %113, %112 : vector<4x256xi1>, vector<4x256xf32>
    %117 = arith.andi %4, %10 : vector<1x256xi1>
    %118 = vector.shape_cast %10 : vector<1x256xi1> to vector<1x256xi1>
    %119 = vector.broadcast %118 : vector<1x256xi1> to vector<4x256xi1>
    %120 = arith.select %119, %98, %102 : vector<4x256xi1>, vector<4x256xf32>
    %121 = vector.shape_cast %4 : vector<1x256xi1> to vector<1x256xi1>
    %122 = vector.broadcast %121 : vector<1x256xi1> to vector<4x256xi1>
    %123 = arith.select %122, %100, %120 : vector<4x256xi1>, vector<4x256xf32>
    %124 = vector.shape_cast %117 : vector<1x256xi1> to vector<1x256xi1>
    %125 = vector.broadcast %124 : vector<1x256xi1> to vector<4x256xi1>
    %126 = arith.select %125, %101, %123 : vector<4x256xi1>, vector<4x256xf32>
    %c1_i32_23 = arith.constant 1 : i32
    %127 = tpu.dynamic_rotate %95 by %c1_i32_23 dim 1 : vector<4x256xf32>, i32 -> vector<4x256xf32>
    %c255_i32_24 = arith.constant 255 : i32
    %128 = tpu.dynamic_rotate %95 by %c255_i32_24 dim 1 : vector<4x256xf32>, i32 -> vector<4x256xf32>
    %129 = vector.shape_cast %8 : vector<1x256xi1> to vector<1x256xi1>
    %130 = vector.broadcast %129 : vector<1x256xi1> to vector<4x256xi1>
    %131 = arith.select %130, %128, %127 : vector<4x256xi1>, vector<4x256xf32>
    %132 = vector.shape_cast %10 : vector<1x256xi1> to vector<1x256xi1>
    %133 = vector.broadcast %132 : vector<1x256xi1> to vector<4x256xi1>
    %134 = arith.select %133, %127, %128 : vector<4x256xi1>, vector<4x256xf32>
    %135 = arith.andi %6, %8 : vector<1x256xi1>
    %136 = vector.shape_cast %8 : vector<1x256xi1> to vector<1x256xi1>
    %137 = vector.broadcast %136 : vector<1x256xi1> to vector<4x256xi1>
    %138 = arith.select %137, %100, %101 : vector<4x256xi1>, vector<4x256xf32>
    %139 = vector.shape_cast %6 : vector<1x256xi1> to vector<1x256xi1>
    %140 = vector.broadcast %139 : vector<1x256xi1> to vector<4x256xi1>
    %141 = arith.select %140, %98, %138 : vector<4x256xi1>, vector<4x256xf32>
    %142 = vector.shape_cast %135 : vector<1x256xi1> to vector<1x256xi1>
    %143 = vector.broadcast %142 : vector<1x256xi1> to vector<4x256xi1>
    %144 = arith.select %143, %102, %141 : vector<4x256xi1>, vector<4x256xf32>
    %145 = vector.shape_cast %6 : vector<1x256xi1> to vector<1x256xi1>
    %146 = vector.broadcast %145 : vector<1x256xi1> to vector<4x256xi1>
    %147 = arith.select %146, %112, %113 : vector<4x256xi1>, vector<4x256xf32>
    %148 = arith.andi %6, %10 : vector<1x256xi1>
    %149 = vector.shape_cast %10 : vector<1x256xi1> to vector<1x256xi1>
    %150 = vector.broadcast %149 : vector<1x256xi1> to vector<4x256xi1>
    %151 = arith.select %150, %101, %100 : vector<4x256xi1>, vector<4x256xf32>
    %152 = vector.shape_cast %6 : vector<1x256xi1> to vector<1x256xi1>
    %153 = vector.broadcast %152 : vector<1x256xi1> to vector<4x256xi1>
    %154 = arith.select %153, %102, %151 : vector<4x256xi1>, vector<4x256xf32>
    %155 = vector.shape_cast %148 : vector<1x256xi1> to vector<1x256xi1>
    %156 = vector.broadcast %155 : vector<1x256xi1> to vector<4x256xi1>
    %157 = arith.select %156, %98, %154 : vector<4x256xi1>, vector<4x256xf32>
    %158 = tpu.concatenate %111, %116, %126, %131, %95, %134, %144, %147, %157 in 0 : vector<4x256xf32>, vector<4x256xf32>, vector<4x256xf32>, vector<4x256xf32>, vector<4x256xf32>, vector<4x256xf32>, vector<4x256xf32>, vector<4x256xf32>, vector<4x256xf32> -> vector<36x256xf32>
    %159 = arith.truncf %158 : vector<36x256xf32> to vector<36x256xbf16>
    %cst_25 = arith.constant dense<0.000000e+00> : vector<4x256xf32>
    %160 = tpu.matmul %97, %159, %cst_25 {dimension_numbers = #tpu.dot_dimension_numbers<[1], [0], [0], [1], [0, 0, 1, 1], [], []>} : vector<4x36xbf16>, vector<36x256xbf16>, vector<4x256xf32> -> vector<4x256xf32>
    %cst_26 = arith.constant dense<0.000000e+00> : vector<4xf32>
    %161 = vector.multi_reduction <add>, %160, %cst_26 [1] : vector<4x256xf32> to vector<4xf32>
    %162 = vector.shape_cast %161 : vector<4xf32> to vector<4x1xf32>
    %cst_27 = arith.constant 3.906250e-03 : f32
    %163 = vector.broadcast %cst_27 : f32 to vector<4x1xf32>
    %164 = arith.mulf %162, %163 : vector<4x1xf32>
    %165 = vector.broadcast %164 : vector<4x1xf32> to vector<4x256xf32>
    %166 = arith.subf %160, %165 : vector<4x256xf32>
    %167 = arith.mulf %166, %166 : vector<4x256xf32>
    %cst_28 = arith.constant dense<0.000000e+00> : vector<4xf32>
    %168 = vector.multi_reduction <add>, %167, %cst_28 [1] : vector<4x256xf32> to vector<4xf32>
    %169 = vector.shape_cast %168 : vector<4xf32> to vector<4x1xf32>
    %cst_29 = arith.constant 3.906250e-03 : f32
    %170 = vector.broadcast %cst_29 : f32 to vector<4x1xf32>
    %171 = arith.mulf %169, %170 : vector<4x1xf32>
    %cst_30 = arith.constant 9.99999974E-6 : f32
    %172 = vector.broadcast %cst_30 : f32 to vector<4x1xf32>
    %173 = arith.addf %171, %172 : vector<4x1xf32>
    %174 = math.rsqrt %173 : vector<4x1xf32>
    %175 = vector.broadcast %174 : vector<4x1xf32> to vector<4x256xf32>
    %176 = arith.mulf %166, %175 : vector<4x256xf32>
    %c0_31 = arith.constant 0 : index
    %c0_32 = arith.constant 0 : index
    %c0_33 = arith.constant 0 : index
    %177 = vector.load %arg1[%c0_31, %c0_32, %c0_33] : memref<1x4x256xf32, #tpu.memory_space<vmem>>, vector<1x4x256xf32>
    %178 = vector.shape_cast %177 : vector<1x4x256xf32> to vector<4x256xf32>
    %179 = arith.addf %178, %176 : vector<4x256xf32>
    %c0_34 = arith.constant 0 : index
    %c0_35 = arith.constant 0 : index
    %c0_36 = arith.constant 0 : index
    %180 = vector.load %arg3[%c0_34, %c0_35, %c0_36] : memref<1x4x256xf32, #tpu.memory_space<vmem>>, vector<1x4x256xf32>
    %181 = vector.shape_cast %180 : vector<1x4x256xf32> to vector<4x256xf32>
    %182 = vector.shape_cast %179 : vector<4x256xf32> to vector<1x4x256xf32>
    tpu.vector_store %arg3[%c0_34, %c0_35, %c0_36], %182 {strides = array<i32>} : memref<1x4x256xf32, #tpu.memory_space<vmem>>, vector<1x4x256xf32>,
    return
  }
  func.func @transform_0(%arg0: i32) -> (i32, i32, i32) {
    %c0_i32 = arith.constant 0 : i32
    %c0_i32_0 = arith.constant 0 : i32
    %c0_i32_1 = arith.constant 0 : i32
    return %arg0, %c0_i32, %c0_i32_0 : i32, i32, i32
  }
  func.func @transform_1(%arg0: i32) -> (i32, i32, i32) {
    %c0_i32 = arith.constant 0 : i32
    %c0_i32_0 = arith.constant 0 : i32
    %c0_i32_1 = arith.constant 0 : i32
    %c0_i32_2 = arith.constant 0 : i32
    return %c0_i32, %c0_i32_0, %c0_i32_1 : i32, i32, i32
  }
  func.func @transform_2(%arg0: i32) -> (i32, i32, i32) {
    %c0_i32 = arith.constant 0 : i32
    %c0_i32_0 = arith.constant 0 : i32
    %c0_i32_1 = arith.constant 0 : i32
    return %arg0, %c0_i32, %c0_i32_0 : i32, i32, i32
  }
}

</mosaic_0001>

<llo_original>
// kernel: tpu_custom_call.1
$region0: #{tpu_custom_call.1}
  #allocation0 [shape = 'u32[]', space=smem, size = 0x4, offset = 0x4, fixed_abs, tag = 'smem constant byte address 0x4 - core index']
  #allocation1 [shape = 'u32[72,128]{1,0:T(1,128)}', space=vmem, size = 0x9000, scoped, tag = 'internal scratch']
  %s0 = inlined_call_operand.hbm [shape: f32[2,4,256], index: 0, kind: input, shape index: {}]
  %s1 = inlined_call_operand.hbm [shape: bf16[2,4,36], index: 1, kind: input, shape index: {}]
  %s2 = inlined_call_operand.hbm [shape: f32[2,4,256], index: 2, kind: output, shape index: {}]
  %s3 = sld [smem:[#allocation0]]
  $region49: #{tpu_custom_call.1} parent=0
    _
  %s5 = ssub.s32 1, %s3
  %s6 = scalar_select 0, %s5, %s3
  $region1: #{tpu_custom_call.1} parent=0
    #allocation2 [shape = 'u8[8192]{0}', space=vmem, size = 0x2000, scoped, tag = 'input window, operand 0']
    #allocation3 [shape = 's32[2]{0}', space=sflag, size = 0x8, scoped, tag = 'scoped memory for tpu_custom_call.1']
    #allocation4 [shape = 's32[2]{0}', space=sflag, size = 0x8, scoped, tag = 'scoped memory for tpu_custom_call.1']
    #allocation5 [shape = 'u8[2048]{0}', space=vmem, size = 0x800, scoped, tag = 'input window, operand 1, single buffered']
    #allocation6 [shape = 's32[1]{0}', space=sflag, size = 0x4, scoped, tag = 'scoped memory for tpu_custom_call.1']
    #allocation7 [shape = 'u8[8192]{0}', space=vmem, size = 0x2000, scoped, tag = 'output window, operand 0']
    %7 = vsyncpa [#allocation3], 0
    %s8 = scalar_lea.sflag [#allocation3], 1
    %9 = vsyncpa %s8, 0
    %10 = vsyncpa [#allocation6], 0
    %11 = vsyncpa [#allocation4], 0
    %s12 = scalar_lea.sflag [#allocation4], 1
    %13 = vsyncpa %s12, 0
    loop: start=0, step=1, limit=4
    $region2: #{tpu_custom_call.1} parent=1 // loop_pre_header
      _
    $region3: #{tpu_custom_call.1} parent=1 // loop_header
      %s15 = sphi 0, %s19
      %p16 = scmp.ge.s32.totalorder %s15, 4
      %s25 = sphi 0, %s27
      %s28 = sphi 0, %s25
      %s29 = sphi 0, %s28
      %s45 = sphi 0, %s29
      %s49 = sphi 0, %s49
      %s51 = sphi 0, %s49
      %s52 = sphi 0, %s51
      %s66 = sphi 0, %s52
      %s72 = sphi 0, %s74
      %s75 = sphi 0, %s72
      %s76 = sphi 0, %s75
      %s92 = sphi 0, %s76
    $region4: #{tpu_custom_call.1} parent=1 // loop_header_branch
      %18 = sbr.rel (%p16) target = $region8
    $region5: #{tpu_custom_call.1} parent=1 // loop_body
      %s20 = ssub.s32 %s15, 1
      %s21 = ssub.s32 %s15, 2
      %s22 = sadd.s32 %s15, 1
      %s23 = ssub.s32 %s15, %s22
      %p24 = scmp.eq.s32.totalorder %s23, 0
      %s26 = sadd.s32 %s25, 1
      %s27 = scalar_select %p24, %s25, %s26
      %p30 = pneg %p24
      %p31 = scmp.eq.s32.totalorder %s15, 1
      %p32 = por %p30, %p31
      %p33 = scmp.ne.s32.totalorder %s25, %s28
      %p34 = scmp.eq.s32.totalorder %s15, 0
      %p35 = por %p33, %p34
      %p36 = scmp.ne.s32.totalorder %s25, %s28
      %p37 = scmp.eq.s32.totalorder %s20, 1
      %p38 = por %p36, %p37
      %p39 = scmp.ne.s32.totalorder %s28, %s29
      %p40 = scmp.eq.s32.totalorder %s20, 0
      %p41 = por %p39, %p40
      %p42 = scmp.ne.s32.totalorder %s28, %s29
      %p43 = scmp.eq.s32.totalorder %s21, 1
      %p44 = por %p42, %p43
      %p46 = scmp.ne.s32.totalorder %s29, %s45
      %p47 = scmp.eq.s32.totalorder %s21, 0
      %p48 = por %p46, %p47
      %s50 = sadd.s32 %s49, 1
      %p53 = scmp.eq.s32.totalorder %s15, 1
      %p54 = scmp.ne.s32.totalorder %s49, %s51
      %p55 = scmp.eq.s32.totalorder %s15, 0
      %p56 = por %p54, %p55
      %p57 = scmp.ne.s32.totalorder %s49, %s51
      %p58 = scmp.eq.s32.totalorder %s20, 1
      %p59 = por %p57, %p58
      %p60 = scmp.ne.s32.totalorder %s51, %s52
      %p61 = scmp.eq.s32.totalorder %s20, 0
      %p62 = por %p60, %p61
      %p63 = scmp.ne.s32.totalorder %s51, %s52
      %p64 = scmp.eq.s32.totalorder %s21, 1
      %p65 = por %p63, %p64
      %p67 = scmp.ne.s32.totalorder %s52, %s66
      %p68 = scmp.eq.s32.totalorder %s21, 0
      %p69 = por %p67, %p68
      %s70 = ssub.s32 %s15, %s22
      %p71 = scmp.eq.s32.totalorder %s70, 0
      %s73 = sadd.s32 %s72, 1
      %s74 = scalar_select %p71, %s72, %s73
      %p77 = pneg %p71
      %p78 = scmp.eq.s32.totalorder %s15, 1
      %p79 = por %p77, %p78
      %p80 = scmp.ne.s32.totalorder %s72, %s75
      %p81 = scmp.eq.s32.totalorder %s15, 0
      %p82 = por %p80, %p81
      %p83 = scmp.ne.s32.totalorder %s72, %s75
      %p84 = scmp.eq.s32.totalorder %s20, 1
      %p85 = por %p83, %p84
      %p86 = scmp.ne.s32.totalorder %s75, %s76
      %p87 = scmp.eq.s32.totalorder %s20, 0
      %p88 = por %p86, %p87
      %p89 = scmp.ne.s32.totalorder %s75, %s76
      %p90 = scmp.eq.s32.totalorder %s21, 1
      %p91 = por %p89, %p90
      %p93 = scmp.ne.s32.totalorder %s76, %s92
      %p94 = scmp.eq.s32.totalorder %s21, 0
      %p95 = por %p93, %p94
      %p96 = scmp.le.s32.totalorder 1, %s15
      %p97 = scmp.lt.s32.totalorder %s15, 3
      %p98 = pnand %p96, %p97
      %p99 = pneg %p98
      // Predicated region
      $region9: #{tpu_custom_call.1} parent=5 // pred_check
        _
      $region10: #{tpu_custom_call.1} parent=5 // pred_check_branch
        %101 = sbr.rel (%p98) target = $region12
      $region11: #{tpu_custom_call.1} parent=5 // pred_region
        %s102 = ssub.s32 %s15, 1
        // Predicated region
        $region13: #{tpu_custom_call.1} parent=11 // pred_check
          %p103 = pneg %p62
        $region14: #{tpu_custom_call.1} parent=11 // pred_check_branch
          %105 = sbr.rel (%p103) target = $region16
        $region15: #{tpu_custom_call.1} parent=11 // pred_region
          %107 = vsyncadd [#allocation6], 0
          %s108 = sshll.u32 %s1, 4
          %s109 = int_to_ptr.hbm [resolvable:$true] %s108
          %s110 = sshll.u32 [#allocation5], 4
          %s111 = int_to_ptr.vmem [resolvable:$true] %s110
          %116 = dma.hbm_to_vmem [thread:$0]  %s109, 64, %s111, [#allocation6], 32, 32, 2
        $region16: #{tpu_custom_call.1} parent=11 // pred_fallthru
          _
      $region12: #{tpu_custom_call.1} parent=5 // pred_fallthru
        _
      %p117 = scmp.lt.s32.totalorder %s15, 2
      // Predicated region
      $region17: #{tpu_custom_call.1} parent=5 // pred_check
        %p118 = pneg %p117
      $region18: #{tpu_custom_call.1} parent=5 // pred_check_branch
        %120 = sbr.rel (%p118) target = $region20
      $region19: #{tpu_custom_call.1} parent=5 // pred_region
        // Predicated region
        $region21: #{tpu_custom_call.1} parent=19 // pred_check
          %p121 = pneg %p35
        $region22: #{tpu_custom_call.1} parent=19 // pred_check_branch
          %123 = sbr.rel (%p121) target = $region24
        $region23: #{tpu_custom_call.1} parent=19 // pred_region
          %s124 = sand.u32 %s25, 1
          %s125 = scalar_lea.sflag [#allocation3], %s124
          %s126 = sand.u32 %s25, 1
          %s127 = smul.addr %s126, 8
          %s128 = scalar_lea.vmem [#allocation2], %s127
          %130 = vsyncadd %s125, 0
          %s131 = smul.addr %s15, 2
          %s132 = smul.addr %s131, 4
          %s133 = scalar_lea.hbm %s0, %s132
          %s135 = sshll.u32 %s133, 4
          %s136 = int_to_ptr.hbm [resolvable:$true] %s135
          %s137 = sshll.u32 %s128, 4
          %s138 = int_to_ptr.vmem [resolvable:$true] %s137
          %140 = dma.hbm_to_vmem [thread:$0]  %s136, 128, %s138, %s125
        $region24: #{tpu_custom_call.1} parent=19 // pred_fallthru
          _
      $region20: #{tpu_custom_call.1} parent=5 // pred_fallthru
        _
      %p141 = scmp.le.s32.totalorder 1, %s15
      %p142 = scmp.lt.s32.totalorder %s15, 3
      %p143 = pnand %p141, %p142
      %p144 = pneg %p143
      // Predicated region
      $region25: #{tpu_custom_call.1} parent=5 // pred_check
        _
      $region26: #{tpu_custom_call.1} parent=5 // pred_check_branch
        %146 = sbr.rel (%p143) target = $region28
      $region27: #{tpu_custom_call.1} parent=5 // pred_region
        %s147 = ssub.s32 %s15, 1
        %s148 = sand.u32 %s28, 1
        %s149 = scalar_lea.sflag [#allocation3], %s148
        %s150 = sand.u32 %s28, 1
        %s151 = smul.addr %s150, 8
        %s152 = scalar_lea.vmem [#allocation2], %s151
        // Predicated region
        $region29: #{tpu_custom_call.1} parent=27 // pred_check
          %p153 = pneg %p41
        $region30: #{tpu_custom_call.1} parent=27 // pred_check_branch
          %155 = sbr.rel (%p153) target = $region32
        $region31: #{tpu_custom_call.1} parent=27 // pred_region
          %157 = dma.done %s149, 128
        $region32: #{tpu_custom_call.1} parent=27 // pred_fallthru
          _
        // Predicated region
        $region33: #{tpu_custom_call.1} parent=27 // pred_check
          %p158 = pneg %p62
        $region34: #{tpu_custom_call.1} parent=27 // pred_check_branch
          %160 = sbr.rel (%p158) target = $region36
        $region35: #{tpu_custom_call.1} parent=27 // pred_region
          %162 = dma.done [#allocation6], 64
        $region36: #{tpu_custom_call.1} parent=27 // pred_fallthru
          _
        %s163 = sand.u32 %s28, 1
        %s164 = scalar_lea.sflag [#allocation3], %s163
        %s165 = sand.u32 %s28, 1
        %s166 = smul.addr %s165, 8
        %s167 = scalar_lea.vmem [#allocation2], %s166
        %p168 = pneg %p41
        %p169 = pneg %p38
        %p170 = pneg %p62
        %p171 = pneg %p59
        %p172 = pneg %p88
        %p173 = pneg %p85
        %s174 = sand.u32 %s75, 1
        %s175 = scalar_lea.sflag [#allocation4], %s174
        %s176 = sand.u32 %s75, 1
        %s177 = smul.addr %s176, 8
        %s178 = scalar_lea.vmem [#allocation7], %s177
        %v180 = vlaneseq
        %v181 = vand.u32 %v180, 127
        %v182 = vadd.s32 %v181, 128
        %v183 = vand.u32 %v181, 15
        %v184 = vand.u32 %v182, 15
        %vm185 = vcmp.lt.s32.totalorder %v181, 16
        %vm186 = vcmp.lt.s32.totalorder %v182, 16
        %vm187 = vcmp.ge.s32.totalorder %v181, 240
        %vm188 = vcmp.ge.s32.totalorder %v182, 240
        %vm189 = vcmp.eq.s32.totalorder %v183, 0
        %vm190 = vcmp.eq.s32.totalorder %v184, 0
        %vm191 = vcmp.eq.s32.totalorder %v183, 15
        %vm192 = vcmp.eq.s32.totalorder %v184, 15
        %v193 = vld [vmem:[%s152] sm:$0xff]
        %v194 = vld [vmem:[#allocation5] sm:$0x3]
        %196 = vst [vmem:[#allocation1] ss:$2 sm:$0xff] %v193
        %v197 = vld.sshfl [vmem:[#allocation1] sm:$0xff pattern:$0x75316420]
        %v198 = vld.sshfl [vmem:[#allocation1 + $0x8] sm:$0xff pattern:$0x75316420]
        %201 = vrot.lane.b32.xlu0 %v197, 17
        %v202 = vpop.permute.xlu0 %201
        %203 = vrot.lane.b32.xlu0 %v198, 17
        %v204 = vpop.permute.xlu0 %203
        %vm205 = vcmp.lt.s32.totalorder %v181, 17
        %v206 = vsel %vm205, %v202, %v204
        %v207 = vsel %vm205, %v204, %v202
        %vm208 = vmand %vm185, %vm189
        %vm209 = vmand %vm186, %vm190
        %210 = vst [vmem:[#allocation1] ss:$2 sm:$0xff] %v193
        %v211 = vld.sshfl [vmem:[#allocation1] sm:$0xff pattern:$0x75316420]
        %v212 = vld.sshfl [vmem:[#allocation1 + $0x8] sm:$0xff pattern:$0x75316420]
        %215 = vrot.lane.b32.xlu0 %v211, 111
        %v216 = vpop.permute.xlu0 %215
        %217 = vrot.lane.b32.xlu0 %v212, 111
        %v218 = vpop.permute.xlu0 %217
        %vm219 = vcmp.lt.s32.totalorder %v181, 111
        %v220 = vsel %vm219, %v216, %v218
        %v221 = vsel %vm219, %v218, %v216
        %222 = vst [vmem:[#allocation1] ss:$2 sm:$0xff] %v193
        %v223 = vld.sshfl [vmem:[#allocation1] sm:$0xff pattern:$0x75316420]
        %v224 = vld.sshfl [vmem:[#allocation1 + $0x8] sm:$0xff pattern:$0x75316420]
        %227 = vrot.lane.b32.xlu0 %v223, 113
        %v228 = vpop.permute.xlu0 %227
        %229 = vrot.lane.b32.xlu0 %v224, 113
        %v230 = vpop.permute.xlu0 %229
        %vm231 = vcmp.lt.s32.totalorder %v181, 113
        %v232 = vsel %vm231, %v228, %v230
        %v233 = vsel %vm231, %v230, %v228
        %234 = vst [vmem:[#allocation1] ss:$2 sm:$0xff] %v193
        %v235 = vld.sshfl [vmem:[#allocation1] sm:$0xff pattern:$0x75316420]
        %v236 = vld.sshfl [vmem:[#allocation1 + $0x8] sm:$0xff pattern:$0x75316420]
        %239 = vrot.lane.b32.xlu0 %v235, 15
        %v240 = vpop.permute.xlu0 %239
        %241 = vrot.lane.b32.xlu0 %v236, 15
        %v242 = vpop.permute.xlu0 %241
        %vm243 = vcmp.lt.s32.totalorder %v181, 15
        %v244 = vsel %vm243, %v240, %v242
        %v245 = vsel %vm243, %v242, %v240
        %v246 = vsel %vm189, 1, 0
        %v247 = vsel %vm190, 1, 0
        %vm248 = vcmp.eq.s32.totalorder %v246, 1
        %vm249 = vcmp.eq.s32.totalorder %v247, 1
        %v250 = vsel %vm248, %v245, %v207
        %v251 = vsel %vm249, %v244, %v206
        %v252 = vsel %vm185, 1, 0
        %v253 = vsel %vm186, 1, 0
        %vm254 = vcmp.eq.s32.totalorder %v252, 1
        %vm255 = vcmp.eq.s32.totalorder %v253, 1
        %v256 = vsel %vm254, %v232, %v250
        %v257 = vsel %vm255, %v233, %v251
        %v258 = vsel %vm208, 1, 0
        %v259 = vsel %vm209, 1, 0
        %vm260 = vcmp.eq.s32.totalorder %v258, 1
        %vm261 = vcmp.eq.s32.totalorder %v259, 1
        %v262 = vsel %vm260, %v220, %v256
        %v263 = vsel %vm261, %v221, %v257
        %264 = vst [vmem:[#allocation1] ss:$2 sm:$0xff] %v193
        %v265 = vld.sshfl [vmem:[#allocation1] sm:$0xff pattern:$0x75316420]
        %v266 = vld.sshfl [vmem:[#allocation1 + $0x8] sm:$0xff pattern:$0x75316420]
        %269 = vrot.lane.b32.xlu0 %v265, 16
        %v270 = vpop.permute.xlu0 %269
        %271 = vrot.lane.b32.xlu0 %v266, 16
        %v272 = vpop.permute.xlu0 %271
        %v273 = vsel %vm185, %v270, %v272
        %v274 = vsel %vm185, %v272, %v270
        %275 = vst [vmem:[#allocation1] ss:$2 sm:$0xff] %v193
        %v276 = vld.sshfl [vmem:[#allocation1] sm:$0xff pattern:$0x75316420]
        %v277 = vld.sshfl [vmem:[#allocation1 + $0x8] sm:$0xff pattern:$0x75316420]
        %280 = vrot.lane.b32.xlu0 %v276, 112
        %v281 = vpop.permute.xlu0 %280
        %282 = vrot.lane.b32.xlu0 %v277, 112
        %v283 = vpop.permute.xlu0 %282
        %vm284 = vcmp.lt.s32.totalorder %v181, 112
        %v285 = vsel %vm284, %v281, %v283
        %v286 = vsel %vm284, %v283, %v281
        %v287 = vsel %vm254, %v285, %v274
        %v288 = vsel %vm255, %v286, %v273
        %vm289 = vmand %vm185, %vm191
        %vm290 = vmand %vm186, %vm192
        %v291 = vsel %vm191, 1, 0
        %v292 = vsel %vm192, 1, 0
        %vm293 = vcmp.eq.s32.totalorder %v291, 1
        %vm294 = vcmp.eq.s32.totalorder %v292, 1
        %v295 = vsel %vm293, %v207, %v245
        %v296 = vsel %vm294, %v206, %v244
        %v297 = vsel %vm254, %v220, %v295
        %v298 = vsel %vm255, %v221, %v296
        %v299 = vsel %vm289, 1, 0
        %v300 = vsel %vm290, 1, 0
        %vm301 = vcmp.eq.s32.totalorder %v299, 1
        %vm302 = vcmp.eq.s32.totalorder %v300, 1
        %v303 = vsel %vm301, %v232, %v297
        %v304 = vsel %vm302, %v233, %v298
        %305 = vst [vmem:[#allocation1] ss:$2 sm:$0xff] %v193
        %v306 = vld.sshfl [vmem:[#allocation1] sm:$0xff pattern:$0x75316420]
        %v307 = vld.sshfl [vmem:[#allocation1 + $0x8] sm:$0xff pattern:$0x75316420]
        %310 = vrot.lane.b32.xlu0 %v306, 1
        %v311 = vpop.permute.xlu0 %310
        %312 = vrot.lane.b32.xlu0 %v307, 1
        %v313 = vpop.permute.xlu0 %312
        %vm314 = vcmp.lt.s32.totalorder %v181, 1
        %v315 = vsel %vm314, %v311, %v313
        %v316 = vsel %vm314, %v313, %v311
        %317 = vst [vmem:[#allocation1] ss:$2 sm:$0xff] %v193
        %v318 = vld.sshfl [vmem:[#allocation1] sm:$0xff pattern:$0x75316420]
        %v319 = vld.sshfl [vmem:[#allocation1 + $0x8] sm:$0xff pattern:$0x75316420]
        %322 = vrot.lane.b32.xlu0 %v318, 127
        %v323 = vpop.permute.xlu0 %322
        %324 = vrot.lane.b32.xlu0 %v319, 127
        %v325 = vpop.permute.xlu0 %324
        %vm326 = vcmp.lt.s32.totalorder %v181, 127
        %v327 = vsel %vm326, %v323, %v325
        %v328 = vsel %vm326, %v325, %v323
        %v329 = vsel %vm248, %v327, %v316
        %v330 = vsel %vm249, %v328, %v315
        %v331 = vsel %vm293, %v316, %v327
        %v332 = vsel %vm294, %v315, %v328
        %vm333 = vmand %vm187, %vm189
        %vm334 = vmand %vm188, %vm190
        %v335 = vsel %vm248, %v220, %v232
        %v336 = vsel %vm249, %v221, %v233
        %v337 = vsel %vm187, 1, 0
        %v338 = vsel %vm188, 1, 0
        %vm339 = vcmp.eq.s32.totalorder %v337, 1
        %vm340 = vcmp.eq.s32.totalorder %v338, 1
        %v341 = vsel %vm339, %v207, %v335
        %v342 = vsel %vm340, %v206, %v336
        %v343 = vsel %vm333, 1, 0
        %v344 = vsel %vm334, 1, 0
        %vm345 = vcmp.eq.s32.totalorder %v343, 1
        %vm346 = vcmp.eq.s32.totalorder %v344, 1
        %v347 = vsel %vm345, %v245, %v341
        %v348 = vsel %vm346, %v244, %v342
        %v349 = vsel %vm339, %v274, %v285
        %v350 = vsel %vm340, %v273, %v286
        %vm351 = vmand %vm187, %vm191
        %vm352 = vmand %vm188, %vm192
        %v353 = vsel %vm293, %v232, %v220
        %v354 = vsel %vm294, %v233, %v221
        %v355 = vsel %vm339, %v245, %v353
        %v356 = vsel %vm340, %v244, %v354
        %v357 = vsel %vm351, 1, 0
        %v358 = vsel %vm352, 1, 0
        %vm359 = vcmp.eq.s32.totalorder %v357, 1
        %vm360 = vcmp.eq.s32.totalorder %v358, 1
        %v361 = vsel %vm359, %v207, %v355
        %v362 = vsel %vm360, %v206, %v356
        %v365 = vrot.slane %v287, 4
        %v366 = vrot.slane %v288, 4
        %v371 = vrot.slane %v329, 4
        %v372 = vrot.slane %v330, 4
        %375 = vst [vmem:[#allocation1] ss:$2 sm:$0xff] %v193
        %v376 = vld.sshfl [vmem:[#allocation1] sm:$0xff pattern:$0x75316420]
        %v377 = vld.sshfl [vmem:[#allocation1 + $0x8] sm:$0xff pattern:$0x75316420]
        %v382 = vrot.slane %v331, 4
        %v383 = vrot.slane %v332, 4
        %v388 = vrot.slane %v349, 4
        %v389 = vrot.slane %v350, 4
        %vm392 = vcmask 1043456
        %v393 = vsel %vm392, %v262, %v365
        %v394 = vsel %vm392, %v263, %v366
        %v395 = vsel %vm392, %v303, %v371
        %v396 = vsel %vm392, %v304, %v372
        %v397 = vsel %vm392, %v376, %v382
        %v398 = vsel %vm392, %v377, %v383
        %v399 = vsel %vm392, %v347, %v388
        %v400 = vsel %vm392, %v348, %v389
        %v401 = vpack.c.bf16 %v395, %v393
        %v402 = vpack.c.bf16 %v396, %v394
        %v403 = vpack.c.bf16 %v399, %v397
        %v404 = vpack.c.bf16 %v400, %v398
        %v405 = vpack.c.bf16 %v361, %v361
        %v406 = vpack.c.bf16 %v362, %v362
        %vm407 = vcmask 293888
        %v409 = vsel %vm407, %v194, 0
        %vm411 = vcmask 1041408
        %v413 = vsel %vm411, %v405, 0
        %v416 = vsel %vm411, %v406, 0
        %418 = vmatpush.bf16.msra.mxu0 0
        %419 = vmatpush.bf16.msra.mxu0 0
        %420 = vmatpush.bf16.msra.mxu0 0
        %421 = vmatpush.bf16.msra.mxu0 0
        %422 = vmatpush.bf16.msra.mxu0 0
        %423 = vmatpush.bf16.msra.mxu0 %v413
        %424 = vmatpush.bf16.msra.mxu0 %v403
        %425 = vmatpush.bf16.msra.mxu0 %v401
        %426 = vmatmul.bf16.gmra.mxu0 %v409
        %v427 = vpop.f32.mrf.mxu0
        %v428 = vadd.f32 0.0, %v427
        %v429 = vpop.f32.mrf.mxu0
        %430 = vdwg.mxu0
        %431 = vmatpush.bf16.msra.mxu0 0
        %432 = vmatpush.bf16.msra.mxu0 0
        %433 = vmatpush.bf16.msra.mxu0 0
        %434 = vmatpush.bf16.msra.mxu0 0
        %435 = vmatpush.bf16.msra.mxu0 0
        %436 = vmatpush.bf16.msra.mxu0 %v416
        %437 = vmatpush.bf16.msra.mxu0 %v404
        %438 = vmatpush.bf16.msra.mxu0 %v402
        %439 = vmatmul.bf16.gmra.mxu0 %v409
        %v440 = vpop.f32.mrf.mxu0
        %v441 = vadd.f32 0.0, %v440
        %v442 = vpop.f32.mrf.mxu0
        %443 = vdwg.mxu0
        %v444 = vsel %vm392, %v428, 0.0
        %v445 = vsel %vm392, %v441, 0.0
        %v446 = vadd.f32 %v444, %v445
        %447 = vadd.xlane.f32.xlu0 %v446
        %v448 = vpop.xlane.xlu0 %447
        %v449 = vmul.f32 %v448, 0.00390625
        %v450 = vsub.f32 %v428, %v449
        %v451 = vsub.f32 %v441, %v449
        %v452 = vmul.f32 %v450, %v450
        %v453 = vmul.f32 %v451, %v451
        %v454 = vsel %vm392, %v452, 0.0
        %v455 = vsel %vm392, %v453, 0.0
        %v456 = vadd.f32 %v454, %v455
        %457 = vadd.xlane.f32.xlu0 %v456
        %v458 = vpop.xlane.xlu0 %457
        %v459 = vmul.f32 %v458, 0.00390625
        %v460 = vadd.f32 %v459, 1e-05
        %v461 = vrsqrt.pop %v460
        %v462 = vmul.f32 %v461, %v460
        %v463 = vmul.f32 %v462, %v461
        %v464 = vmul.f32 0.5, %v463
        %v465 = vsub.f32 1.5, %v464
        %v466 = vmul.f32 %v461, %v465
        %vm467 = vweird.f32 %v460
        %vm468 = vweird.f32 %v461
        %vm469 = vmor %vm467, %vm468
        %v470 = vsel %vm469, %v461, %v466
        %v471 = vmul.f32 %v450, %v470
        %v472 = vmul.f32 %v451, %v470
        %v473 = vmax.f32 %v471, 0.0
        %v474 = vmax.f32 %v472, 0.0
        %s475 = scalar_lea.vmem [#allocation5], 2
        %v476 = vld [vmem:[%s475] sm:$0x3]
        %477 = vrot.lane.b32.xlu0 %v473, 17
        %v478 = vpop.permute.xlu0 %477
        %479 = vrot.lane.b32.xlu0 %v474, 17
        %v480 = vpop.permute.xlu0 %479
        %v481 = vsel %vm205, %v478, %v480
        %v482 = vsel %vm205, %v480, %v478
        %483 = vrot.lane.b32.xlu0 %v473, 111
        %v484 = vpop.permute.xlu0 %483
        %485 = vrot.lane.b32.xlu0 %v474, 111
        %v486 = vpop.permute.xlu0 %485
        %v487 = vsel %vm219, %v484, %v486
        %v488 = vsel %vm219, %v486, %v484
        %489 = vrot.lane.b32.xlu0 %v473, 113
        %v490 = vpop.permute.xlu0 %489
        %491 = vrot.lane.b32.xlu0 %v474, 113
        %v492 = vpop.permute.xlu0 %491
        %v493 = vsel %vm231, %v490, %v492
        %v494 = vsel %vm231, %v492, %v490
        %495 = vrot.lane.b32.xlu0 %v473, 15
        %v496 = vpop.permute.xlu0 %495
        %497 = vrot.lane.b32.xlu0 %v474, 15
        %v498 = vpop.permute.xlu0 %497
        %v499 = vsel %vm243, %v496, %v498
        %v500 = vsel %vm243, %v498, %v496
        %v501 = vsel %vm248, %v500, %v482
        %v502 = vsel %vm249, %v499, %v481
        %v503 = vsel %vm254, %v493, %v501
        %v504 = vsel %vm255, %v494, %v502
        %v505 = vsel %vm260, %v487, %v503
        %v506 = vsel %vm261, %v488, %v504
        %507 = vrot.lane.b32.xlu0 %v473, 16
        %v508 = vpop.permute.xlu0 %507
        %509 = vrot.lane.b32.xlu0 %v474, 16
        %v510 = vpop.permute.xlu0 %509
        %v511 = vsel %vm185, %v508, %v510
        %v512 = vsel %vm185, %v510, %v508
        %513 = vrot.lane.b32.xlu0 %v473, 112
        %v514 = vpop.permute.xlu0 %513
        %515 = vrot.lane.b32.xlu0 %v474, 112
        %v516 = vpop.permute.xlu0 %515
        %v517 = vsel %vm284, %v514, %v516
        %v518 = vsel %vm284, %v516, %v514
        %v519 = vsel %vm254, %v517, %v512
        %v520 = vsel %vm255, %v518, %v511
        %v521 = vsel %vm293, %v482, %v500
        %v522 = vsel %vm294, %v481, %v499
        %v523 = vsel %vm254, %v487, %v521
        %v524 = vsel %vm255, %v488, %v522
        %v525 = vsel %vm301, %v493, %v523
        %v526 = vsel %vm302, %v494, %v524
        %527 = vrot.lane.b32.xlu0 %v473, 1
        %v528 = vpop.permute.xlu0 %527
        %529 = vrot.lane.b32.xlu0 %v474, 1
        %v530 = vpop.permute.xlu0 %529
        %v531 = vsel %vm314, %v528, %v530
        %v532 = vsel %vm314, %v530, %v528
        %533 = vrot.lane.b32.xlu0 %v473, 127
        %v534 = vpop.permute.xlu0 %533
        %535 = vrot.lane.b32.xlu0 %v474, 127
        %v536 = vpop.permute.xlu0 %535
        %v537 = vsel %vm326, %v534, %v536
        %v538 = vsel %vm326, %v536, %v534
        %v539 = vsel %vm248, %v537, %v532
        %v540 = vsel %vm249, %v538, %v531
        %v541 = vsel %vm293, %v532, %v537
        %v542 = vsel %vm294, %v531, %v538
        %v543 = vsel %vm248, %v487, %v493
        %v544 = vsel %vm249, %v488, %v494
        %v545 = vsel %vm339, %v482, %v543
        %v546 = vsel %vm340, %v481, %v544
        %v547 = vsel %vm345, %v500, %v545
        %v548 = vsel %vm346, %v499, %v546
        %v549 = vsel %vm339, %v512, %v517
        %v550 = vsel %vm340, %v511, %v518
        %v551 = vsel %vm293, %v493, %v487
        %v552 = vsel %vm294, %v494, %v488
        %v553 = vsel %vm339, %v500, %v551
        %v554 = vsel %vm340, %v499, %v552
        %v555 = vsel %vm359, %v482, %v553
        %v556 = vsel %vm360, %v481, %v554
        %v559 = vrot.slane %v519, 4
        %v560 = vrot.slane %v520, 4
        %v565 = vrot.slane %v539, 4
        %v566 = vrot.slane %v540, 4
        %v571 = vrot.slane %v541, 4
        %v572 = vrot.slane %v542, 4
        %v577 = vrot.slane %v549, 4
        %v578 = vrot.slane %v550, 4
        %v581 = vsel %vm392, %v505, %v559
        %v582 = vsel %vm392, %v506, %v560
        %v583 = vsel %vm392, %v525, %v565
        %v584 = vsel %vm392, %v526, %v566
        %v585 = vsel %vm392, %v473, %v571
        %v586 = vsel %vm392, %v474, %v572
        %v587 = vsel %vm392, %v547, %v577
        %v588 = vsel %vm392, %v548, %v578
        %v589 = vpack.c.bf16 %v583, %v581
        %v590 = vpack.c.bf16 %v584, %v582
        %v591 = vpack.c.bf16 %v587, %v585
        %v592 = vpack.c.bf16 %v588, %v586
        %v593 = vpack.c.bf16 %v555, %v555
        %v594 = vpack.c.bf16 %v556, %v556
        %v596 = vsel %vm407, %v476, 0
        %v599 = vsel %vm411, %v593, 0
        %v602 = vsel %vm411, %v594, 0
        %604 = vmatpush.bf16.msra.mxu0 0
        %605 = vmatpush.bf16.msra.mxu0 0
        %606 = vmatpush.bf16.msra.mxu0 0
        %607 = vmatpush.bf16.msra.mxu0 0
        %608 = vmatpush.bf16.msra.mxu0 0
        %609 = vmatpush.bf16.msra.mxu0 %v599
        %610 = vmatpush.bf16.msra.mxu0 %v591
        %611 = vmatpush.bf16.msra.mxu0 %v589
        %612 = vmatmul.bf16.gmra.mxu0 %v596
        %v613 = vpop.f32.mrf.mxu0
        %v614 = vadd.f32 0.0, %v613
        %v615 = vpop.f32.mrf.mxu0
        %616 = vdwg.mxu0
        %617 = vmatpush.bf16.msra.mxu0 0
        %618 = vmatpush.bf16.msra.mxu0 0
        %619 = vmatpush.bf16.msra.mxu0 0
        %620 = vmatpush.bf16.msra.mxu0 0
        %621 = vmatpush.bf16.msra.mxu0 0
        %622 = vmatpush.bf16.msra.mxu0 %v602
        %623 = vmatpush.bf16.msra.mxu0 %v592
        %624 = vmatpush.bf16.msra.mxu0 %v590
        %625 = vmatmul.bf16.gmra.mxu0 %v596
        %v626 = vpop.f32.mrf.mxu0
        %v627 = vadd.f32 0.0, %v626
        %v628 = vpop.f32.mrf.mxu0
        %629 = vdwg.mxu0
        %v630 = vsel %vm392, %v614, 0.0
        %v631 = vsel %vm392, %v627, 0.0
        %v632 = vadd.f32 %v630, %v631
        %633 = vadd.xlane.f32.xlu0 %v632
        %v634 = vpop.xlane.xlu0 %633
        %v635 = vmul.f32 %v634, 0.00390625
        %v636 = vsub.f32 %v614, %v635
        %v637 = vsub.f32 %v627, %v635
        %v638 = vmul.f32 %v636, %v636
        %v639 = vmul.f32 %v637, %v637
        %v640 = vsel %vm392, %v638, 0.0
        %v641 = vsel %vm392, %v639, 0.0
        %v642 = vadd.f32 %v640, %v641
        %643 = vadd.xlane.f32.xlu0 %v642
        %v644 = vpop.xlane.xlu0 %643
        %v645 = vmul.f32 %v644, 0.00390625
        %v646 = vadd.f32 %v645, 1e-05
        %v647 = vrsqrt.pop %v646
        %v648 = vmul.f32 %v647, %v646
        %v649 = vmul.f32 %v648, %v647
        %v650 = vmul.f32 0.5, %v649
        %v651 = vsub.f32 1.5, %v650
        %v652 = vmul.f32 %v647, %v651
        %vm653 = vweird.f32 %v646
        %vm654 = vweird.f32 %v647
        %vm655 = vmor %vm653, %vm654
        %v656 = vsel %vm655, %v647, %v652
        %v657 = vmul.f32 %v636, %v656
        %v658 = vmul.f32 %v637, %v656
        %v661 = vrot.slane %v658, 4
        %v662 = vsel %vm392, %v657, %v661
        %v664 = vadd.f32 %v193, %v662
        %665 = vst [vmem:[%s178] sm:$0xff] %v664
        %s666 = sand.u32 %s75, 1
        %s667 = scalar_lea.sflag [#allocation4], %s666
        %s668 = sand.u32 %s75, 1
        %s669 = smul.addr %s668, 8
        %s670 = scalar_lea.vmem [#allocation7], %s669
        // Predicated region
        $region37: #{tpu_custom_call.1} parent=27 // pred_check
          %p671 = pneg %p85
        $region38: #{tpu_custom_call.1} parent=27 // pred_check_branch
          %673 = sbr.rel (%p671) target = $region40
        $region39: #{tpu_custom_call.1} parent=27 // pred_region
          %675 = vsyncadd %s667, 0
          %s676 = smul.addr %s20, 2
          %s677 = smul.addr %s676, 4
          %s678 = scalar_lea.hbm %s2, %s677
          %s680 = sshll.u32 %s670, 4
          %s681 = int_to_ptr.vmem [resolvable:$true] %s680
          %s682 = sshll.u32 %s678, 4
          %s683 = int_to_ptr.hbm [resolvable:$true] %s682
          %685 = dma.vmem_to_hbm [thread:$0]  %s681, 128, %s683, %s667
        $region40: #{tpu_custom_call.1} parent=27 // pred_fallthru
          _
      $region28: #{tpu_custom_call.1} parent=5 // pred_fallthru
        _
      %p686 = scmp.le.s32.totalorder 2, %s15
      // Predicated region
      $region41: #{tpu_custom_call.1} parent=5 // pred_check
        %p687 = pneg %p686
      $region42: #{tpu_custom_call.1} parent=5 // pred_check_branch
        %689 = sbr.rel (%p687) target = $region44
      $region43: #{tpu_custom_call.1} parent=5 // pred_region
        %s690 = ssub.s32 %s15, 2
        // Predicated region
        $region45: #{tpu_custom_call.1} parent=43 // pred_check
          %p691 = pneg %p91
        $region46: #{tpu_custom_call.1} parent=43 // pred_check_branch
          %693 = sbr.rel (%p691) target = $region48
        $region47: #{tpu_custom_call.1} parent=43 // pred_region
          %s694 = sand.u32 %s76, 1
          %s695 = scalar_lea.sflag [#allocation4], %s694
          %s696 = sand.u32 %s76, 1
          %s697 = smul.addr %s696, 8
          %s698 = scalar_lea.vmem [#allocation7], %s697
          %700 = dma.done %s695, 128
        $region48: #{tpu_custom_call.1} parent=43 // pred_fallthru
          _
      $region44: #{tpu_custom_call.1} parent=5 // pred_fallthru
        _
    $region6: #{tpu_custom_call.1} parent=1 // loop_footer
      %s19 = sadd.s32 1, %s15
    $region7: #{tpu_custom_call.1} parent=1 // loop_footer_branch
      %14 = sbr.rel target = $region3
    $region8: #{tpu_custom_call.1} parent=1 // loop_exit
      _
    %701 = vsyncpa [#allocation3], 1
    %s702 = scalar_lea.sflag [#allocation3], 1
    %703 = vsyncpa %s702, 1
    %704 = vsyncpa [#allocation6], 1
    %705 = vsyncpa [#allocation4], 1
    %s706 = scalar_lea.sflag [#allocation4], 1
    %707 = vsyncpa %s706, 1

</llo_original>
